<compile_context>
chip_gen: v6e
topology: v6e:2x2x1
jax: 0.10.0
libtpu: 0.0.40
codegen_flags: <defaults>
</compile_context>

<pallas_src>
import functools

import jax
import jax.numpy as jnp
from jax.experimental import pallas as pl
from jax.experimental.pallas import tpu as pltpu

N_STATES = 4       # CartPole-v1 observation dim
N_ACTIONS = 2      # CartPole-v1 action dim
HIDDEN = 50

HIDDEN_PAD = 128   # lane-aligned hidden dim (zero pad; ReLU(0)=0 so inert)
ACT_OUT = 8        # HBM-side output lanes (>= N_ACTIONS, == full last dim)

# Packed parameter slab layout (rows); each block starts on an 8-row boundary.
_W1_ROW = 0        # rows 0..7   : w1 (only first N_STATES rows are nonzero)
_B1_ROW = 8        # row  8      : b1
_W2_ROW = 16       # rows 16..143: w2 (padded to 128 x 128)
_B2_ROW = 144      # row  144    : b2
PARAM_ROWS = 152   # multiple of 8


def net_kernel(x_ref, p_ref, o_ref):
    """x_ref: (tb, 4) f32; p_ref: (152, 128) f32 slab; o_ref: (tb, 8) f32."""
    w1 = p_ref[_W1_ROW:_W1_ROW + N_STATES, :]          # (4, 128)
    b1 = p_ref[_B1_ROW:_B1_ROW + 1, :]                 # (1, 128)
    w2 = p_ref[_W2_ROW:_W2_ROW + HIDDEN_PAD, :]        # (128, 128)
    b2 = p_ref[_B2_ROW:_B2_ROW + 1, :]                 # (1, 128)

    # fc1 + ReLU (MXU matmul, VPU max) -- f32 accumulation.  K=4 contraction;
    # Mosaic zero-pads the minor dims internally.
    h = jnp.dot(x_ref[...], w1, preferred_element_type=jnp.float32)
    h = jnp.maximum(h + b1, 0.0)                       # (tb, 128)
    # Output layer stays 128-wide in VMEM; only the first 8 lanes hit HBM.
    y = jnp.dot(h, w2, preferred_element_type=jnp.float32) + b2   # (tb, 128)
    o_ref[...] = y[:, :ACT_OUT].astype(o_ref.dtype)


def pack_params(w1, b1, w2, b2):
    """Pack (in,out)-layout params into one pre-padded (152, 128) f32 slab."""
    slab = jnp.zeros((PARAM_ROWS, HIDDEN_PAD), jnp.float32)
    slab = slab.at[_W1_ROW:_W1_ROW + N_STATES, :HIDDEN].set(w1.astype(jnp.float32))
    slab = slab.at[_B1_ROW, :HIDDEN].set(b1.reshape(-1).astype(jnp.float32))
    slab = slab.at[_W2_ROW:_W2_ROW + HIDDEN, :N_ACTIONS].set(w2.astype(jnp.float32))
    slab = slab.at[_B2_ROW, :N_ACTIONS].set(b2.reshape(-1).astype(jnp.float32))
    return slab


@functools.partial(jax.jit, static_argnames=("batch_tile",))
def net_forward(x, param_slab, *, batch_tile=2048):
    """x: (B, N_STATES); param_slab: (152, 128) f32 from pack_params.

    Returns actions_value: (B, N_ACTIONS) f32.
    """
    orig_b = x.shape[0]
    x = x.astype(jnp.float32)
    if x.shape[0] < 8:
        # Tiny batches: pad to one full 8-row sublane block (negligible cost).
        x = jnp.pad(x, ((0, 8 - x.shape[0]), (0, 0)))
    B = x.shape[0]

    # Batch tile: multiple of 8, <= batch_tile, and <= ~ceil(B/2) so the
    # "parallel" grid axis has >= 2 steps whenever B > 8 (v7x has 2 TCs).
    bt = max(8, (batch_tile // 8) * 8)
    half = ((pl.cdiv(B, 2) + 7) // 8) * 8
    tb = max(8, min(bt, half))            # for B >= 8 this guarantees tb <= B
    grid = pl.cdiv(B, tb)
    bp = grid * tb                        # output rows (>= B; extras sliced off)

    flops = 2 * bp * (N_STATES * HIDDEN_PAD + HIDDEN_PAD * HIDDEN_PAD)
    bytes_accessed = (B * N_STATES * 4
                      + PARAM_ROWS * HIDDEN_PAD * 4
                      + bp * ACT_OUT * 4)

    out = pl.pallas_call(
        net_kernel,
        out_shape=jax.ShapeDtypeStruct((bp, ACT_OUT), jnp.float32),
        grid_spec=pltpu.PrefetchScalarGridSpec(
            num_scalar_prefetch=0,
            grid=(grid,),
            in_specs=[
                # (tb, 4): last dim == full array dim, so no host-side pad.
                pl.BlockSpec((tb, N_STATES), lambda i: (i, 0)),
                # Parameter slab: same block every step -> stays VMEM-resident.
                pl.BlockSpec((PARAM_ROWS, HIDDEN_PAD), lambda i: (0, 0)),
            ],
            # Narrow (8-lane) HBM-side output block; 8 == full array last dim.
            out_specs=pl.BlockSpec((tb, ACT_OUT), lambda i: (i, 0)),
        ),
        compiler_params=pltpu.CompilerParams(
            dimension_semantics=("parallel",),
        ),
        cost_estimate=pl.CostEstimate(
            flops=flops, transcendentals=0, bytes_accessed=bytes_accessed),
    )(x, param_slab)

    # Drop ragged-tile / small-batch padding rows and the 6 padded lanes.
    return out[:orig_b, :N_ACTIONS]


def init_params(key):
    """Matches the PyTorch module's init; weights stored as (in, out)."""
    k1, k2, k3, k4 = jax.random.split(key, 4)
    # weight.data.normal_(0, 0.1), stored transposed relative to PyTorch.
    w1 = (0.1 * jax.random.normal(k1, (N_STATES, HIDDEN))).astype(jnp.float32)
    w2 = (0.1 * jax.random.normal(k2, (HIDDEN, N_ACTIONS))).astype(jnp.float32)
    # PyTorch Linear default bias init: U(-1/sqrt(fan_in), 1/sqrt(fan_in)).
    b1 = (jax.random.uniform(k3, (1, HIDDEN), minval=-1.0, maxval=1.0)
          / jnp.sqrt(N_STATES)).astype(jnp.float32)
    b2 = (jax.random.uniform(k4, (1, N_ACTIONS), minval=-1.0, maxval=1.0)
          / jnp.sqrt(HIDDEN)).astype(jnp.float32)
    return w1, b1, w2, b2


if __name__ == "__main__":
    key = jax.random.PRNGKey(0)
    kx, kp = jax.random.split(key)
    w1, b1, w2, b2 = init_params(kp)
    param_slab = pack_params(w1, b1, w2, b2)

    def reference(x):
        return jnp.maximum(x @ w1 + b1, 0.0) @ w2 + b2

    # Exercise exact-tile (8), tiny (5, padded), and ragged multi-tile (19).
    for B in (8, 5, 19):
        x = jax.random.normal(jax.random.fold_in(kx, B), (B, N_STATES),
                              dtype=jnp.float32)
        actions_value = jax.block_until_ready(net_forward(x, param_slab))
        assert actions_value.shape == (B, N_ACTIONS)
        assert jnp.allclose(actions_value, reference(x), atol=1e-5, rtol=1e-5)

    print("KERNEL_OK")
</pallas_src>

<mosaic_0001>
module attributes {stable_mosaic.version = 11 : i64} {
  func.func @net_kernel(%arg0: i32, %arg1: memref<8x4xf32, #tpu.memory_space<vmem>>, %arg2: memref<152x128xf32, #tpu.memory_space<vmem>>, %arg3: memref<8x8xf32, #tpu.memory_space<vmem>>) attributes {dimension_semantics = [#tpu.dimension_semantics<parallel>], iteration_bounds = array<i64: 1>, scalar_prefetch = 0 : i64, scratch_operands = 0 : i64, tpu.core_type = #tpu.core_type<tc>, window_params = [{transform_indices = @transform_0, window_bounds = array<i64: 8, 4>}, {pipeline_mode = #tpu.pipeline_mode<synchronous>, transform_indices = @transform_1, window_bounds = array<i64: 152, 128>}, {transform_indices = @transform_2, window_bounds = array<i64: 8, 8>}]} {
    %c0 = arith.constant 0 : index
    %c0_0 = arith.constant 0 : index
    %0 = vector.load %arg2[%c0, %c0_0] : memref<152x128xf32, #tpu.memory_space<vmem>>, vector<4x128xf32>
    %c8 = arith.constant 8 : index
    %c0_1 = arith.constant 0 : index
    %1 = vector.load %arg2[%c8, %c0_1] : memref<152x128xf32, #tpu.memory_space<vmem>>, vector<1x128xf32>
    %c16 = arith.constant 16 : index
    %c0_2 = arith.constant 0 : index
    %2 = vector.load %arg2[%c16, %c0_2] : memref<152x128xf32, #tpu.memory_space<vmem>>, vector<128x128xf32>
    %c144 = arith.constant 144 : index
    %c0_3 = arith.constant 0 : index
    %3 = vector.load %arg2[%c144, %c0_3] : memref<152x128xf32, #tpu.memory_space<vmem>>, vector<1x128xf32>
    %c0_4 = arith.constant 0 : index
    %c0_5 = arith.constant 0 : index
    %4 = vector.load %arg1[%c0_4, %c0_5] : memref<8x4xf32, #tpu.memory_space<vmem>>, vector<8x4xf32>
    %cst = arith.constant dense<0.000000e+00> : vector<8x128xf32>
    %5 = tpu.matmul %4, %0, %cst {dimension_numbers = #tpu.dot_dimension_numbers<[1], [0], [0], [1], [0, 0, 1, 1], [], []>} : vector<8x4xf32>, vector<4x128xf32>, vector<8x128xf32> -> vector<8x128xf32>
    %6 = vector.broadcast %1 : vector<1x128xf32> to vector<8x128xf32>
    %7 = arith.addf %5, %6 : vector<8x128xf32>
    %cst_6 = arith.constant 0.000000e+00 : f32
    %8 = vector.broadcast %cst_6 : f32 to vector<8x128xf32>
    %9 = arith.maximumf %7, %8 : vector<8x128xf32>
    %cst_7 = arith.constant dense<0.000000e+00> : vector<8x128xf32>
    %10 = tpu.matmul %9, %2, %cst_7 {dimension_numbers = #tpu.dot_dimension_numbers<[1], [0], [0], [1], [0, 0, 1, 1], [], []>} : vector<8x128xf32>, vector<128x128xf32>, vector<8x128xf32> -> vector<8x128xf32>
    %11 = vector.broadcast %3 : vector<1x128xf32> to vector<8x128xf32>
    %12 = arith.addf %10, %11 : vector<8x128xf32>
    %13 = vector.extract_strided_slice %12 {offsets = [0, 0], sizes = [8, 8], strides = [1, 1]} : vector<8x128xf32> to vector<8x8xf32>
    %c0_8 = arith.constant 0 : index
    %c0_9 = arith.constant 0 : index
    %14 = vector.load %arg3[%c0_8, %c0_9] : memref<8x8xf32, #tpu.memory_space<vmem>>, vector<8x8xf32>
    tpu.vector_store %arg3[%c0_8, %c0_9], %13 {strides = array<i32>} : memref<8x8xf32, #tpu.memory_space<vmem>>, vector<8x8xf32>,
    return
  }
  func.func @transform_0(%arg0: i32) -> (i32, i32) {
    %c0_i32 = arith.constant 0 : i32
    %c0_i32_0 = arith.constant 0 : i32
    return %arg0, %c0_i32 : i32, i32
  }
  func.func @transform_1(%arg0: i32) -> (i32, i32) {
    %c0_i32 = arith.constant 0 : i32
    %c0_i32_0 = arith.constant 0 : i32
    %c0_i32_1 = arith.constant 0 : i32
    return %c0_i32, %c0_i32_0 : i32, i32
  }
  func.func @transform_2(%arg0: i32) -> (i32, i32) {
    %c0_i32 = arith.constant 0 : i32
    %c0_i32_0 = arith.constant 0 : i32
    return %arg0, %c0_i32 : i32, i32
  }
}

</mosaic_0001>

<llo_original>
// kernel: net_forward.1
$region0: #{net_forward.1}
  #allocation0 [shape = 'u32[]', space=smem, size = 0x4, offset = 0x4, fixed_abs, tag = 'smem constant byte address 0x4 - core index']
  #allocation1 [shape = 'u32[144,128]{1,0:T(1,128)}', space=vmem, size = 0x12000, scoped, tag = 'internal scratch']
  %s0 = inlined_call_operand.vmem [shape: f32[8,4], index: 0, kind: input, shape index: {}]
  %s1 = inlined_call_operand.hbm [shape: f32[152,128], index: 1, kind: input, shape index: {}]
  %s2 = inlined_call_operand.vmem [shape: f32[8,8], index: 2, kind: output, shape index: {}]
  %s3 = sld [smem:[#allocation0]]
  $region22: #{net_forward.1} parent=0
    _
  %s5 = ssub.s32 1, %s3
  %s6 = scalar_select 0, %s5, %s3
  $region1: #{net_forward.1} parent=0
    #allocation2 [shape = 'u8[77824]{0}', space=vmem, size = 0x13000, scoped, tag = 'input window, operand 1, single buffered']
    #allocation3 [shape = 's32[1]{0}', space=sflag, size = 0x4, scoped, tag = 'scoped memory for net_forward.1']
    %7 = vsyncpa [#allocation3], 0
    // Predicated region
    $region2: #{net_forward.1} parent=1 // pred_check
      _
    $region3: #{net_forward.1} parent=1 // pred_check_branch
      %9 = sbr.rel (0) target = $region5
    $region4: #{net_forward.1} parent=1 // pred_region
      _
    $region5: #{net_forward.1} parent=1 // pred_fallthru
      _
    // Predicated region
    $region6: #{net_forward.1} parent=1 // pred_check
      _
    $region7: #{net_forward.1} parent=1 // pred_check_branch
      %11 = sbr.rel (0) target = $region9
    $region8: #{net_forward.1} parent=1 // pred_region
      %s13 = ssub.s32 2432, 2432
      %14 = vsyncadd [#allocation3], %s13
      %s15 = sshll.u32 [#allocation2], 4
      %s16 = int_to_ptr.vmem [resolvable:$true] %s15
      %21 = dma.hbm_to_vmem [thread:$0]  %s1, 2432, %s16, [#allocation3], 128, 128, 8
    $region9: #{net_forward.1} parent=1 // pred_fallthru
      _
    // Predicated region
    $region10: #{net_forward.1} parent=1 // pred_check
      _
    $region11: #{net_forward.1} parent=1 // pred_check_branch
      %23 = sbr.rel (0) target = $region13
    $region12: #{net_forward.1} parent=1 // pred_region
      %24 = dma.done [#allocation3], 2432
    $region13: #{net_forward.1} parent=1 // pred_fallthru
      _
    %v25 = vld [vmem:[#allocation2] sm:$0xf]
    %v26 = vld [vmem:[#allocation2 + $0x8] sm:$0x1]
    %v27 = vld [vmem:[#allocation2 + $0x10] sm:$0xff]
    %v28 = vld [vmem:[#allocation2 + $0x18] sm:$0xff]
    %v29 = vld [vmem:[#allocation2 + $0x20] sm:$0xff]
    %v30 = vld [vmem:[#allocation2 + $0x28] sm:$0xff]
    %v31 = vld [vmem:[#allocation2 + $0x30] sm:$0xff]
    %v32 = vld [vmem:[#allocation2 + $0x38] sm:$0xff]
    %v33 = vld [vmem:[#allocation2 + $0x40] sm:$0xff]
    %v34 = vld [vmem:[#allocation2 + $0x48] sm:$0xff]
    %v35 = vld [vmem:[#allocation2 + $0x50] sm:$0xff]
    %v36 = vld [vmem:[#allocation2 + $0x58] sm:$0xff]
    %v37 = vld [vmem:[#allocation2 + $0x60] sm:$0xff]
    %v38 = vld [vmem:[#allocation2 + $0x68] sm:$0xff]
    %v39 = vld [vmem:[#allocation2 + $0x70] sm:$0xff]
    %v40 = vld [vmem:[#allocation2 + $0x78] sm:$0xff]
    %v41 = vld [vmem:[#allocation2 + $0x80] sm:$0xff]
    %v42 = vld [vmem:[#allocation2 + $0x88] sm:$0xff]
    %v43 = vld [vmem:[#allocation2 + $0x90] sm:$0x1]
    %v44 = vld [vmem:[%s0] sm:$0xff]
    %v45 = vlaneseq
    %v46 = vshrl.u32 %v45, 7
    %v47 = vsub.s32 0, %v46
    %v48 = vrot.slane %v26, %v47
    %vm49 = vcmask 31744
    %v51 = vsel %vm49, %v44, 0
    %vm53 = vcmask 1043456
    %v55 = vsel %vm53, %v25, 0
    %57 = vmatprep.subr.mxu0 0.0
    %58 = vmatpush1.msra.mxu0 0.0
    %59 = vmatprep.subr.mxu0 0.0
    %60 = vmatpush1.msra.mxu0 0.0
    %61 = vmatprep.subr.mxu0 0.0
    %62 = vmatpush1.msra.mxu0 0.0
    %63 = vmatprep.subr.mxu0 0.0
    %64 = vmatpush1.msra.mxu0 0.0
    %65 = vmatprep.subr.mxu0 0.0
    %66 = vmatpush1.msra.mxu0 0.0
    %67 = vmatprep.subr.mxu0 0.0
    %68 = vmatpush1.msra.mxu0 0.0
    %69 = vmatprep.subr.mxu0 0.0
    %70 = vmatpush1.msra.mxu0 0.0
    %71 = vmatprep.subr.mxu0 0.0
    %72 = vmatpush1.msra.mxu0 0.0
    %73 = vmatprep.subr.mxu0 0.0
    %74 = vmatpush1.msra.mxu0 0.0
    %75 = vmatprep.subr.mxu0 0.0
    %76 = vmatpush1.msra.mxu0 0.0
    %77 = vmatprep.subr.mxu0 0.0
    %78 = vmatpush1.msra.mxu0 0.0
    %79 = vmatprep.subr.mxu0 0.0
    %80 = vmatpush1.msra.mxu0 0.0
    %81 = vmatprep.subr.mxu0 0.0
    %82 = vmatpush1.msra.mxu0 0.0
    %83 = vmatprep.subr.mxu0 0.0
    %84 = vmatpush1.msra.mxu0 0.0
    %85 = vmatprep.subr.mxu0 0.0
    %86 = vmatpush1.msra.mxu0 0.0
    %87 = vmatprep.subr.mxu0 0.0
    %88 = vmatpush1.msra.mxu0 %v55
    %89 = vmatprep.subr.mxu0 0.0
    %90 = vmatpush2.msra.mxu0 0.0
    %91 = vmatprep.subr.mxu0 0.0
    %92 = vmatpush2.msra.mxu0 0.0
    %93 = vmatprep.subr.mxu0 0.0
    %94 = vmatpush2.msra.mxu0 0.0
    %95 = vmatprep.subr.mxu0 0.0
    %96 = vmatpush2.msra.mxu0 0.0
    %97 = vmatprep.subr.mxu0 0.0
    %98 = vmatpush2.msra.mxu0 0.0
    %99 = vmatprep.subr.mxu0 0.0
    %100 = vmatpush2.msra.mxu0 0.0
    %101 = vmatprep.subr.mxu0 0.0
    %102 = vmatpush2.msra.mxu0 0.0
    %103 = vmatprep.subr.mxu0 0.0
    %104 = vmatpush2.msra.mxu0 0.0
    %105 = vmatprep.subr.mxu0 0.0
    %106 = vmatpush2.msra.mxu0 0.0
    %107 = vmatprep.subr.mxu0 0.0
    %108 = vmatpush2.msra.mxu0 0.0
    %109 = vmatprep.subr.mxu0 0.0
    %110 = vmatpush2.msra.mxu0 0.0
    %111 = vmatprep.subr.mxu0 0.0
    %112 = vmatpush2.msra.mxu0 0.0
    %113 = vmatprep.subr.mxu0 0.0
    %114 = vmatpush2.msra.mxu0 0.0
    %115 = vmatprep.subr.mxu0 0.0
    %116 = vmatpush2.msra.mxu0 0.0
    %117 = vmatprep.subr.mxu0 0.0
    %118 = vmatpush2.msra.mxu0 0.0
    %119 = vmatprep.subr.mxu0 0.0
    %120 = vmatpush2.msra.mxu0 0.0
    %121 = vmatprep.mubr.f32.mxu0 0.0
    %122 = vmatmul.mubr.f32.gmra.mxu0 %v51
    %v123 = vpop.f32.mrf.mxu0
    %v124 = vadd.f32 %v48, %v123
    %v125 = vpop.f32.mrf.mxu0
    %126 = vdwg.mxu0
    %v127 = vmax.f32 %v124, 0.0
    %v128 = vlaneseq
    %v129 = vshrl.u32 %v128, 7
    %v130 = vsub.s32 0, %v129
    %v131 = vrot.slane %v43, %v130
    %132 = vmatprep.subr.mxu0 0.0
    %133 = vmatpush1.msra.mxu0 %v42
    %134 = vmatprep.subr.mxu0 0.0
    %135 = vmatpush1.msra.mxu0 %v41
    %136 = vmatprep.subr.mxu0 0.0
    %137 = vmatpush1.msra.mxu0 %v40
    %138 = vmatprep.subr.mxu0 0.0
    %139 = vmatpush1.msra.mxu0 %v39
    %140 = vmatprep.subr.mxu0 0.0
    %141 = vmatpush1.msra.mxu0 %v38
    %142 = vmatprep.subr.mxu0 0.0
    %143 = vmatpush1.msra.mxu0 %v37
    %144 = vmatprep.subr.mxu0 0.0
    %145 = vmatpush1.msra.mxu0 %v36
    %146 = vmatprep.subr.mxu0 0.0
    %147 = vmatpush1.msra.mxu0 %v35
    %148 = vmatprep.subr.mxu0 0.0
    %149 = vmatpush1.msra.mxu0 %v34
    %150 = vmatprep.subr.mxu0 0.0
    %151 = vmatpush1.msra.mxu0 %v33
    %152 = vmatprep.subr.mxu0 0.0
    %153 = vmatpush1.msra.mxu0 %v32
    %154 = vmatprep.subr.mxu0 0.0
    %155 = vmatpush1.msra.mxu0 %v31
    %156 = vmatprep.subr.mxu0 0.0
    %157 = vmatpush1.msra.mxu0 %v30
    %158 = vmatprep.subr.mxu0 0.0
    %159 = vmatpush1.msra.mxu0 %v29
    %160 = vmatprep.subr.mxu0 0.0
    %161 = vmatpush1.msra.mxu0 %v28
    %162 = vmatprep.subr.mxu0 0.0
    %163 = vmatpush1.msra.mxu0 %v27
    %164 = vmatprep.subr.mxu0 0.0
    %165 = vmatpush2.msra.mxu0 0.0
    %166 = vmatprep.subr.mxu0 0.0
    %167 = vmatpush2.msra.mxu0 0.0
    %168 = vmatprep.subr.mxu0 0.0
    %169 = vmatpush2.msra.mxu0 0.0
    %170 = vmatprep.subr.mxu0 0.0
    %171 = vmatpush2.msra.mxu0 0.0
    %172 = vmatprep.subr.mxu0 0.0
    %173 = vmatpush2.msra.mxu0 0.0
    %174 = vmatprep.subr.mxu0 0.0
    %175 = vmatpush2.msra.mxu0 0.0
    %176 = vmatprep.subr.mxu0 0.0
    %177 = vmatpush2.msra.mxu0 0.0
    %178 = vmatprep.subr.mxu0 0.0
    %179 = vmatpush2.msra.mxu0 0.0
    %180 = vmatprep.subr.mxu0 0.0
    %181 = vmatpush2.msra.mxu0 0.0
    %182 = vmatprep.subr.mxu0 0.0
    %183 = vmatpush2.msra.mxu0 0.0
    %184 = vmatprep.subr.mxu0 0.0
    %185 = vmatpush2.msra.mxu0 0.0
    %186 = vmatprep.subr.mxu0 0.0
    %187 = vmatpush2.msra.mxu0 0.0
    %188 = vmatprep.subr.mxu0 0.0
    %189 = vmatpush2.msra.mxu0 0.0
    %190 = vmatprep.subr.mxu0 0.0
    %191 = vmatpush2.msra.mxu0 0.0
    %192 = vmatprep.subr.mxu0 0.0
    %193 = vmatpush2.msra.mxu0 0.0
    %194 = vmatprep.subr.mxu0 0.0
    %195 = vmatpush2.msra.mxu0 0.0
    %196 = vmatprep.mubr.f32.mxu0 0.0
    %197 = vmatmul.mubr.f32.gmra.mxu0 %v127
    %v198 = vpop.f32.mrf.mxu0
    %v199 = vadd.f32 %v131, %v198
    %v200 = vpop.f32.mrf.mxu0
    %201 = vdwg.mxu0
    %vm202 = vcmask 64512
    %203 = vst.msk [vmem:[%s2] sm:$0xff] %vm202, %v199
    // Predicated region
    $region14: #{net_forward.1} parent=1 // pred_check
      _
    $region15: #{net_forward.1} parent=1 // pred_check_branch
      %205 = sbr.rel (0) target = $region17
    $region16: #{net_forward.1} parent=1 // pred_region
      _
    $region17: #{net_forward.1} parent=1 // pred_fallthru
      _
    // Predicated region
    $region18: #{net_forward.1} parent=1 // pred_check
      _
    $region19: #{net_forward.1} parent=1 // pred_check_branch
      %207 = sbr.rel (0) target = $region21
    $region20: #{net_forward.1} parent=1 // pred_region
      _
    $region21: #{net_forward.1} parent=1 // pred_fallthru
      _
    %208 = vsyncpa [#allocation3], 1

</llo_original>
